<compile_context>
chip_gen: v5e
topology: v5e:2x2
jax: 0.10.0
libtpu: 0.0.40
codegen_flags: <defaults>
</compile_context>

<pallas_src>
import functools

import jax
import jax.numpy as jnp
from jax import lax
from jax.experimental import pallas as pl
from jax.experimental.pallas import tpu as pltpu

C_IN, C_MID, N_CLS = 4, 32, 10
KH = KW = 3
K_PATCH = KH * KW * C_IN   # 36 -> single MXU matmul K dimension
C_PAD = 128                # conv output channels, padded lane-dense
NCLS_PAD = 128             # head outputs, padded lane-dense


def _cdiv(a, b):
    return (a + b - 1) // b


def _choose_batch_tile(batch, max_tile=8):
    """Largest tile <= max_tile that still leaves >= 2 grid steps (v7x 2-TC split)."""
    bt = min(max_tile, max(1, batch))
    while bt > 1 and _cdiv(batch, bt) < 2:
        bt //= 2
    return bt


# ----------------------------- Pallas kernels ------------------------------ #

def _fused_backbone_kernel(x_ref, wc_ref, bc_ref, pool_ref, wh_ref, bh_ref,
                           o_ref, *, inv_hw):
    """conv3x3(+bias, ReLU) -> global-avg-pool -> linear head for one batch tile.

    x_ref:    (1, B_TILE*H*W, 36)  bf16 pre-interleaved 3x3 patches
    wc_ref:   (36, 128)            bf16 conv weight (lane-dense Cout)
    bc_ref:   (1, 128)             f32  conv bias
    pool_ref: (B_TILE, B_TILE*H*W) bf16 block-diagonal ones (per-image sum)
    wh_ref:   (128, 128)           bf16 head weight
    bh_ref:   (1, 128)             f32  head bias
    o_ref:    (1, B_TILE, 128)     f32  logits (lane-padded)
    """
    # Whole 3x3 conv of the batch tile as ONE K=36 MXU matmul, f32 accumulate.
    acc = jnp.dot(x_ref[0], wc_ref[...], preferred_element_type=jnp.float32)
    feat = jnp.maximum(acc + bc_ref[...], 0.0)              # bias + ReLU in f32

    # Global average pool on the MXU: block-diagonal ones -> per-image channel
    # sums (bf16 operands, f32 accumulate), then one f32 scale by 1/(H*W).
    pooled = jnp.dot(pool_ref[...], feat.astype(jnp.bfloat16),
                     preferred_element_type=jnp.float32) * inv_hw

    logits = jnp.dot(pooled.astype(jnp.bfloat16), wh_ref[...],
                     preferred_element_type=jnp.float32) + bh_ref[...]
    o_ref[0] = logits


def _ce_loss_kernel(logit_ref, label_ref, loss_ref):
    """nn.CrossEntropyLoss(reduction='mean') on lane-padded logits.

    One-hot is built in-kernel from an iota compare against (B, 1) int32
    labels (no (B, N_CLS) one-hot array in HBM); the scalar loss is written to
    an SMEM (1, 1) output.
    """
    logits = logit_ref[...]                                  # (B, NCLS_PAD) f32
    lane = lax.broadcasted_iota(jnp.int32, logits.shape, 1)
    masked = jnp.where(lane < N_CLS, logits, -1e30)          # hide padding lanes
    m = jnp.max(masked, axis=-1, keepdims=True)
    lse = m + jnp.log(jnp.sum(jnp.exp(masked - m), axis=-1, keepdims=True))
    onehot = (lane == label_ref[...]).astype(jnp.float32)    # labels: (B, 1) i32
    correct = jnp.sum(onehot * logits, axis=-1, keepdims=True)
    loss_ref[0, 0] = jnp.mean(lse - correct)


# ----------------------------- kernel wrappers ------------------------------ #

def backbone_forward(params, img_nchw):
    """Fused conv3x3+ReLU -> global-avg-pool -> head.

    Returns lane-padded logits (B, NCLS_PAD); the first N_CLS lanes are real.
    """
    B, C, H, W = img_nchw.shape
    HW = H * W
    b_tile = _choose_batch_tile(B)
    grid_b = _cdiv(B, b_tile)
    b_pad = grid_b * b_tile

    # 3x3 patch extraction in the wrapper (9x inflation is ~20 KB/image here):
    # patches[b, h*W+w, (kh*KW+kw)*C_IN + c] = padded_x[b, h+kh, w+kw, c].
    x = jnp.transpose(img_nchw, (0, 2, 3, 1))                # NCHW -> NHWC
    xp = jnp.pad(x, ((0, 0), (1, 1), (1, 1), (0, 0)))
    taps = [xp[:, kh:kh + H, kw:kw + W, :]
            for kh in range(KH) for kw in range(KW)]
    patches = jnp.stack(taps, axis=3).reshape(B, HW, K_PATCH)
    if b_pad != B:
        patches = jnp.pad(patches, ((0, b_pad - B), (0, 0), (0, 0)))
    x_tiles = patches.reshape(grid_b, b_tile * HW, K_PATCH).astype(jnp.bfloat16)

    # Conv weight (Cout, Cin, kh, kw) -> (kh, kw, Cin, Cout) -> (36, 128) bf16.
    wc = jnp.transpose(params["conv_w"], (2, 3, 1, 0)).reshape(K_PATCH, C_MID)
    wc = jnp.pad(wc, ((0, 0), (0, C_PAD - C_MID))).astype(jnp.bfloat16)
    bc = jnp.pad(params["conv_b"], (0, C_PAD - C_MID))
    bc = bc.reshape(1, C_PAD).astype(jnp.float32)

    # Head weight/bias padded lane-dense; bf16 operands for the MXU.
    wh = jnp.pad(params["fc_w"],
                 ((0, C_PAD - C_MID), (0, NCLS_PAD - N_CLS))).astype(jnp.bfloat16)
    bh = jnp.pad(params["fc_b"], (0, NCLS_PAD - N_CLS))
    bh = bh.reshape(1, NCLS_PAD).astype(jnp.float32)

    # Block-diagonal ones: row i sums the rows of image i (exact in bf16);
    # the 1/(H*W) scale is applied in f32 inside the kernel.
    row_img = jnp.arange(b_tile)[:, None]
    col_img = jnp.arange(b_tile * HW)[None, :] // HW
    pool = (row_img == col_img).astype(jnp.bfloat16)

    kernel = functools.partial(_fused_backbone_kernel, inv_hw=1.0 / float(HW))

    out = pl.pallas_call(
        kernel,
        out_shape=jax.ShapeDtypeStruct((grid_b, b_tile, NCLS_PAD), jnp.float32),
        grid_spec=pltpu.PrefetchScalarGridSpec(
            num_scalar_prefetch=0,
            grid=(grid_b,),
            in_specs=[
                pl.BlockSpec((1, b_tile * HW, K_PATCH), lambda g: (g, 0, 0)),
                pl.BlockSpec((K_PATCH, C_PAD), lambda g: (0, 0)),
                pl.BlockSpec((1, C_PAD), lambda g: (0, 0)),
                pl.BlockSpec((b_tile, b_tile * HW), lambda g: (0, 0)),
                pl.BlockSpec((C_PAD, NCLS_PAD), lambda g: (0, 0)),
                pl.BlockSpec((1, NCLS_PAD), lambda g: (0, 0)),
            ],
            out_specs=pl.BlockSpec((1, b_tile, NCLS_PAD), lambda g: (g, 0, 0)),
        ),
        compiler_params=pltpu.CompilerParams(
            dimension_semantics=("parallel",),       # batch tiles across TCs
            vmem_limit_bytes=32 * 1024 * 1024,       # explicit; v7x-safe
        ),
    )(x_tiles, wc, bc, pool, wh, bh)
    return out.reshape(b_pad, NCLS_PAD)[:B]


def cross_entropy_loss(logits_padded, labels):
    B = logits_padded.shape[0]
    labels2 = labels.astype(jnp.int32).reshape(B, 1)
    loss = pl.pallas_call(
        _ce_loss_kernel,
        out_shape=jax.ShapeDtypeStruct((1, 1), jnp.float32),
        in_specs=[pl.BlockSpec(memory_space=pltpu.MemorySpace.VMEM),
                  pl.BlockSpec(memory_space=pltpu.MemorySpace.VMEM)],
        out_specs=pl.BlockSpec(memory_space=pltpu.MemorySpace.SMEM),
    )(logits_padded.astype(jnp.float32), labels2)
    return loss[0, 0]


# --------------------------- Classifier structure --------------------------- #

def classifier_forward(params, data, training=True, has_losses=True):
    """Mirrors Classifier.forward: dict in, preds / (preds,target) / (preds,losses)."""
    image = data["img"]
    target = data.get("labels", None)
    logits_padded = backbone_forward(params, image)
    preds = logits_padded[:, :N_CLS]
    if target is None:
        return preds
    if (not training) or (not has_losses):
        return (preds, target)
    losses = cross_entropy_loss(logits_padded, target)
    return (preds, losses)


def init_params(key):
    k1, k2 = jax.random.split(key, 2)
    return {
        "conv_w": 0.1 * jax.random.normal(k1, (C_MID, C_IN, KH, KW), jnp.float32),
        "conv_b": jnp.zeros((C_MID,), jnp.float32),
        "fc_w": 0.1 * jax.random.normal(k2, (C_MID, N_CLS), jnp.float32),
        "fc_b": jnp.zeros((N_CLS,), jnp.float32),
    }


# ------------------------------ pure-JAX reference --------------------------- #

def _reference_logits(params, img_nchw):
    feat = lax.conv_general_dilated(
        img_nchw, params["conv_w"], (1, 1), "SAME",
        dimension_numbers=("NCHW", "OIHW", "NCHW"))
    feat = jnp.maximum(feat + params["conv_b"][None, :, None, None], 0.0)
    pooled = feat.mean(axis=(2, 3))
    return pooled @ params["fc_w"] + params["fc_b"]


def _reference_ce(logits, labels):
    lse = jax.scipy.special.logsumexp(logits, axis=-1)
    picked = jnp.take_along_axis(logits, labels[:, None], axis=-1)[:, 0]
    return jnp.mean(lse - picked)


# TODO(synk): fuse_model / set_qconfig / set_calibration_qconfig (PyTorch
# quantization plumbing) have no Pallas equivalent and are not modeled.

if __name__ == "__main__":
    key = jax.random.PRNGKey(0)
    kp, kimg, klab = jax.random.split(key, 3)
    params = init_params(kp)

    data = {
        "img": jax.random.normal(kimg, (2, C_IN, 16, 16), jnp.float32),
        "labels": jax.random.randint(klab, (2,), 0, N_CLS, dtype=jnp.int32),
    }

    # training path: (preds, losses)
    preds, loss = classifier_forward(params, data, training=True)
    jax.block_until_ready((preds, loss))
    assert preds.shape == (2, N_CLS)
    assert loss.shape == ()

    # parity vs. pure-JAX f32 reference (bf16 MXU operands -> loose tolerance)
    ref_logits = _reference_logits(params, data["img"])
    ref_loss = _reference_ce(ref_logits, data["labels"])
    assert float(jnp.max(jnp.abs(preds - ref_logits))) < 0.05
    assert abs(float(loss) - float(ref_loss)) < 0.05

    # eval path: (preds, target)
    preds_eval, tgt = classifier_forward(params, data, training=False)
    jax.block_until_ready(preds_eval)
    assert preds_eval.shape == (2, N_CLS)
    assert tgt.shape == (2,)

    # inference path (no labels): preds only
    preds_only = classifier_forward(params, {"img": data["img"]})
    jax.block_until_ready(preds_only)
    assert preds_only.shape == (2, N_CLS)

    print("KERNEL_OK")
</pallas_src>

<mosaic_0001>
module attributes {stable_mosaic.version = 11 : i64} {
  func.func @_fused_backbone_kernel(%arg0: i32, %arg1: memref<1x256x36xbf16, #tpu.memory_space<vmem>>, %arg2: memref<36x128xbf16, #tpu.memory_space<vmem>>, %arg3: memref<1x128xf32, #tpu.memory_space<vmem>>, %arg4: memref<1x256xbf16, #tpu.memory_space<vmem>>, %arg5: memref<128x128xbf16, #tpu.memory_space<vmem>>, %arg6: memref<1x128xf32, #tpu.memory_space<vmem>>, %arg7: memref<1x1x128xf32, #tpu.memory_space<vmem>>) attributes {dimension_semantics = [#tpu.dimension_semantics<parallel>], iteration_bounds = array<i64: 2>, scalar_prefetch = 0 : i64, scratch_operands = 0 : i64, tpu.core_type = #tpu.core_type<tc>, window_params = [{transform_indices = @transform_0, window_bounds = array<i64: 1, 256, 36>}, {pipeline_mode = #tpu.pipeline_mode<synchronous>, transform_indices = @transform_1, window_bounds = array<i64: 36, 128>}, {pipeline_mode = #tpu.pipeline_mode<synchronous>, transform_indices = @transform_2, window_bounds = array<i64: 1, 128>}, {pipeline_mode = #tpu.pipeline_mode<synchronous>, transform_indices = @transform_3, window_bounds = array<i64: 1, 256>}, {pipeline_mode = #tpu.pipeline_mode<synchronous>, transform_indices = @transform_4, window_bounds = array<i64: 128, 128>}, {pipeline_mode = #tpu.pipeline_mode<synchronous>, transform_indices = @transform_5, window_bounds = array<i64: 1, 128>}, {transform_indices = @transform_6, window_bounds = array<i64: 1, 1, 128>}]} {
    %c0 = arith.constant 0 : index
    %c0_0 = arith.constant 0 : index
    %c0_1 = arith.constant 0 : index
    %0 = vector.load %arg1[%c0, %c0_0, %c0_1] : memref<1x256x36xbf16, #tpu.memory_space<vmem>>, vector<1x256x36xbf16>
    %1 = vector.shape_cast %0 : vector<1x256x36xbf16> to vector<256x36xbf16>
    %c0_2 = arith.constant 0 : index
    %c0_3 = arith.constant 0 : index
    %2 = vector.load %arg2[%c0_2, %c0_3] : memref<36x128xbf16, #tpu.memory_space<vmem>>, vector<36x128xbf16>
    %cst = arith.constant dense<0.000000e+00> : vector<256x128xf32>
    %3 = tpu.matmul %1, %2, %cst {dimension_numbers = #tpu.dot_dimension_numbers<[1], [0], [0], [1], [0, 0, 1, 1], [], []>} : vector<256x36xbf16>, vector<36x128xbf16>, vector<256x128xf32> -> vector<256x128xf32>
    %c0_4 = arith.constant 0 : index
    %c0_5 = arith.constant 0 : index
    %4 = vector.load %arg3[%c0_4, %c0_5] : memref<1x128xf32, #tpu.memory_space<vmem>>, vector<1x128xf32>
    %5 = vector.broadcast %4 : vector<1x128xf32> to vector<256x128xf32>
    %6 = arith.addf %3, %5 : vector<256x128xf32>
    %cst_6 = arith.constant 0.000000e+00 : f32
    %7 = vector.broadcast %cst_6 : f32 to vector<256x128xf32>
    %8 = arith.maximumf %6, %7 : vector<256x128xf32>
    %c0_7 = arith.constant 0 : index
    %c0_8 = arith.constant 0 : index
    %9 = vector.load %arg4[%c0_7, %c0_8] : memref<1x256xbf16, #tpu.memory_space<vmem>>, vector<1x256xbf16>
    %10 = arith.truncf %8 : vector<256x128xf32> to vector<256x128xbf16>
    %cst_9 = arith.constant dense<0.000000e+00> : vector<1x128xf32>
    %11 = tpu.matmul %9, %10, %cst_9 {dimension_numbers = #tpu.dot_dimension_numbers<[1], [0], [0], [1], [0, 0, 1, 1], [], []>} : vector<1x256xbf16>, vector<256x128xbf16>, vector<1x128xf32> -> vector<1x128xf32>
    %cst_10 = arith.constant 3.906250e-03 : f32
    %12 = vector.broadcast %cst_10 : f32 to vector<1x128xf32>
    %13 = arith.mulf %11, %12 : vector<1x128xf32>
    %14 = arith.truncf %13 : vector<1x128xf32> to vector<1x128xbf16>
    %c0_11 = arith.constant 0 : index
    %c0_12 = arith.constant 0 : index
    %15 = vector.load %arg5[%c0_11, %c0_12] : memref<128x128xbf16, #tpu.memory_space<vmem>>, vector<128x128xbf16>
    %cst_13 = arith.constant dense<0.000000e+00> : vector<1x128xf32>
    %16 = tpu.matmul %14, %15, %cst_13 {dimension_numbers = #tpu.dot_dimension_numbers<[1], [0], [0], [1], [0, 0, 1, 1], [], []>} : vector<1x128xbf16>, vector<128x128xbf16>, vector<1x128xf32> -> vector<1x128xf32>
    %c0_14 = arith.constant 0 : index
    %c0_15 = arith.constant 0 : index
    %17 = vector.load %arg6[%c0_14, %c0_15] : memref<1x128xf32, #tpu.memory_space<vmem>>, vector<1x128xf32>
    %18 = arith.addf %16, %17 : vector<1x128xf32>
    %c0_16 = arith.constant 0 : index
    %c0_17 = arith.constant 0 : index
    %c0_18 = arith.constant 0 : index
    %19 = vector.load %arg7[%c0_16, %c0_17, %c0_18] : memref<1x1x128xf32, #tpu.memory_space<vmem>>, vector<1x1x128xf32>
    %20 = vector.shape_cast %19 : vector<1x1x128xf32> to vector<1x128xf32>
    %21 = vector.shape_cast %18 : vector<1x128xf32> to vector<1x1x128xf32>
    tpu.vector_store %arg7[%c0_16, %c0_17, %c0_18], %21 {strides = array<i32>} : memref<1x1x128xf32, #tpu.memory_space<vmem>>, vector<1x1x128xf32>,
    return
  }
  func.func @transform_0(%arg0: i32) -> (i32, i32, i32) {
    %c0_i32 = arith.constant 0 : i32
    %c0_i32_0 = arith.constant 0 : i32
    %c0_i32_1 = arith.constant 0 : i32
    return %arg0, %c0_i32, %c0_i32_0 : i32, i32, i32
  }
  func.func @transform_1(%arg0: i32) -> (i32, i32) {
    %c0_i32 = arith.constant 0 : i32
    %c0_i32_0 = arith.constant 0 : i32
    %c0_i32_1 = arith.constant 0 : i32
    return %c0_i32, %c0_i32_0 : i32, i32
  }
  func.func @transform_2(%arg0: i32) -> (i32, i32) {
    %c0_i32 = arith.constant 0 : i32
    %c0_i32_0 = arith.constant 0 : i32
    %c0_i32_1 = arith.constant 0 : i32
    return %c0_i32, %c0_i32_0 : i32, i32
  }
  func.func @transform_3(%arg0: i32) -> (i32, i32) {
    %c0_i32 = arith.constant 0 : i32
    %c0_i32_0 = arith.constant 0 : i32
    %c0_i32_1 = arith.constant 0 : i32
    return %c0_i32, %c0_i32_0 : i32, i32
  }
  func.func @transform_4(%arg0: i32) -> (i32, i32) {
    %c0_i32 = arith.constant 0 : i32
    %c0_i32_0 = arith.constant 0 : i32
    %c0_i32_1 = arith.constant 0 : i32
    return %c0_i32, %c0_i32_0 : i32, i32
  }
  func.func @transform_5(%arg0: i32) -> (i32, i32) {
    %c0_i32 = arith.constant 0 : i32
    %c0_i32_0 = arith.constant 0 : i32
    %c0_i32_1 = arith.constant 0 : i32
    return %c0_i32, %c0_i32_0 : i32, i32
  }
  func.func @transform_6(%arg0: i32) -> (i32, i32, i32) {
    %c0_i32 = arith.constant 0 : i32
    %c0_i32_0 = arith.constant 0 : i32
    %c0_i32_1 = arith.constant 0 : i32
    return %arg0, %c0_i32, %c0_i32_0 : i32, i32, i32
  }
}

</mosaic_0001>

<llo_original>
// kernel: tpu_custom_call.1
$region0: #{tpu_custom_call.1}
  #allocation0 [shape = 'u32[]', space=smem, size = 0x4, offset = 0x4, fixed_abs, tag = 'smem constant byte address 0x4 - core index']
  #allocation1 [shape = 'u32[72,128]{1,0:T(1,128)}', space=vmem, size = 0x9000, scoped, tag = 'internal scratch']
  %s0 = inlined_call_operand.vmem [shape: bf16[2,256,36], index: 0, kind: input, shape index: {}]
  %s1 = inlined_call_operand.vmem [shape: bf16[36,128], index: 1, kind: input, shape index: {}]
  %s2 = inlined_call_operand.vmem [shape: f32[1,128], index: 2, kind: input, shape index: {}]
  %s3 = inlined_call_operand.vmem [shape: bf16[1,256], index: 3, kind: input, shape index: {}]
  %s4 = inlined_call_operand.vmem [shape: bf16[128,128], index: 4, kind: input, shape index: {}]
  %s5 = inlined_call_operand.vmem [shape: f32[1,128], index: 5, kind: input, shape index: {}]
  %s6 = inlined_call_operand.hbm [shape: f32[2,1,128], index: 6, kind: output, shape index: {}]
  %s7 = sld [smem:[#allocation0]]
  $region57: #{tpu_custom_call.1} parent=0
    _
  %s9 = ssub.s32 1, %s7
  %s10 = scalar_select 0, %s9, %s7
  $region1: #{tpu_custom_call.1} parent=0
    #allocation2 [shape = 'u8[1024]{0}', space=vmem, size = 0x400, scoped, tag = 'output window, operand 0']
    #allocation3 [shape = 's32[2]{0}', space=sflag, size = 0x8, scoped, tag = 'scoped memory for tpu_custom_call.1']
    %11 = vsyncpa [#allocation3], 0
    %s12 = scalar_lea.sflag [#allocation3], 1
    %13 = vsyncpa %s12, 0
    loop: start=0, step=1, limit=4
    $region2: #{tpu_custom_call.1} parent=1 // loop_pre_header
      _
    $region3: #{tpu_custom_call.1} parent=1 // loop_header
      %s15 = sphi 0, %s19
      %p16 = scmp.ge.s32.totalorder %s15, 4
      %s25 = sphi 0, %s27
      %s28 = sphi 0, %s25
      %s29 = sphi 0, %s28
      %s45 = sphi 0, %s29
      %s49 = sphi 0, %s49
      %s51 = sphi 0, %s49
      %s52 = sphi 0, %s51
      %s66 = sphi 0, %s52
      %s70 = sphi 0, %s70
      %s72 = sphi 0, %s70
      %s73 = sphi 0, %s72
      %s87 = sphi 0, %s73
      %s91 = sphi 0, %s91
      %s93 = sphi 0, %s91
      %s94 = sphi 0, %s93
      %s108 = sphi 0, %s94
      %s112 = sphi 0, %s112
      %s114 = sphi 0, %s112
      %s115 = sphi 0, %s114
      %s129 = sphi 0, %s115
      %s133 = sphi 0, %s133
      %s135 = sphi 0, %s133
      %s136 = sphi 0, %s135
      %s150 = sphi 0, %s136
      %s156 = sphi 0, %s158
      %s159 = sphi 0, %s156
      %s160 = sphi 0, %s159
      %s176 = sphi 0, %s160
    $region4: #{tpu_custom_call.1} parent=1 // loop_header_branch
      %18 = sbr.rel (%p16) target = $region8
    $region5: #{tpu_custom_call.1} parent=1 // loop_body
      %s20 = ssub.s32 %s15, 1
      %s21 = ssub.s32 %s15, 2
      %s22 = sadd.s32 %s15, 1
      %s23 = ssub.s32 %s15, %s22
      %p24 = scmp.eq.s32.totalorder %s23, 0
      %s26 = sadd.s32 %s25, 1
      %s27 = scalar_select %p24, %s25, %s26
      %p30 = pneg %p24
      %p31 = scmp.eq.s32.totalorder %s15, 1
      %p32 = por %p30, %p31
      %p33 = scmp.ne.s32.totalorder %s25, %s28
      %p34 = scmp.eq.s32.totalorder %s15, 0
      %p35 = por %p33, %p34
      %p36 = scmp.ne.s32.totalorder %s25, %s28
      %p37 = scmp.eq.s32.totalorder %s20, 1
      %p38 = por %p36, %p37
      %p39 = scmp.ne.s32.totalorder %s28, %s29
      %p40 = scmp.eq.s32.totalorder %s20, 0
      %p41 = por %p39, %p40
      %p42 = scmp.ne.s32.totalorder %s28, %s29
      %p43 = scmp.eq.s32.totalorder %s21, 1
      %p44 = por %p42, %p43
      %p46 = scmp.ne.s32.totalorder %s29, %s45
      %p47 = scmp.eq.s32.totalorder %s21, 0
      %p48 = por %p46, %p47
      %s50 = sadd.s32 %s49, 1
      %p53 = scmp.eq.s32.totalorder %s15, 1
      %p54 = scmp.ne.s32.totalorder %s49, %s51
      %p55 = scmp.eq.s32.totalorder %s15, 0
      %p56 = por %p54, %p55
      %p57 = scmp.ne.s32.totalorder %s49, %s51
      %p58 = scmp.eq.s32.totalorder %s20, 1
      %p59 = por %p57, %p58
      %p60 = scmp.ne.s32.totalorder %s51, %s52
      %p61 = scmp.eq.s32.totalorder %s20, 0
      %p62 = por %p60, %p61
      %p63 = scmp.ne.s32.totalorder %s51, %s52
      %p64 = scmp.eq.s32.totalorder %s21, 1
      %p65 = por %p63, %p64
      %p67 = scmp.ne.s32.totalorder %s52, %s66
      %p68 = scmp.eq.s32.totalorder %s21, 0
      %p69 = por %p67, %p68
      %s71 = sadd.s32 %s70, 1
      %p74 = scmp.eq.s32.totalorder %s15, 1
      %p75 = scmp.ne.s32.totalorder %s70, %s72
      %p76 = scmp.eq.s32.totalorder %s15, 0
      %p77 = por %p75, %p76
      %p78 = scmp.ne.s32.totalorder %s70, %s72
      %p79 = scmp.eq.s32.totalorder %s20, 1
      %p80 = por %p78, %p79
      %p81 = scmp.ne.s32.totalorder %s72, %s73
      %p82 = scmp.eq.s32.totalorder %s20, 0
      %p83 = por %p81, %p82
      %p84 = scmp.ne.s32.totalorder %s72, %s73
      %p85 = scmp.eq.s32.totalorder %s21, 1
      %p86 = por %p84, %p85
      %p88 = scmp.ne.s32.totalorder %s73, %s87
      %p89 = scmp.eq.s32.totalorder %s21, 0
      %p90 = por %p88, %p89
      %s92 = sadd.s32 %s91, 1
      %p95 = scmp.eq.s32.totalorder %s15, 1
      %p96 = scmp.ne.s32.totalorder %s91, %s93
      %p97 = scmp.eq.s32.totalorder %s15, 0
      %p98 = por %p96, %p97
      %p99 = scmp.ne.s32.totalorder %s91, %s93
      %p100 = scmp.eq.s32.totalorder %s20, 1
      %p101 = por %p99, %p100
      %p102 = scmp.ne.s32.totalorder %s93, %s94
      %p103 = scmp.eq.s32.totalorder %s20, 0
      %p104 = por %p102, %p103
      %p105 = scmp.ne.s32.totalorder %s93, %s94
      %p106 = scmp.eq.s32.totalorder %s21, 1
      %p107 = por %p105, %p106
      %p109 = scmp.ne.s32.totalorder %s94, %s108
      %p110 = scmp.eq.s32.totalorder %s21, 0
      %p111 = por %p109, %p110
      %s113 = sadd.s32 %s112, 1
      %p116 = scmp.eq.s32.totalorder %s15, 1
      %p117 = scmp.ne.s32.totalorder %s112, %s114
      %p118 = scmp.eq.s32.totalorder %s15, 0
      %p119 = por %p117, %p118
      %p120 = scmp.ne.s32.totalorder %s112, %s114
      %p121 = scmp.eq.s32.totalorder %s20, 1
      %p122 = por %p120, %p121
      %p123 = scmp.ne.s32.totalorder %s114, %s115
      %p124 = scmp.eq.s32.totalorder %s20, 0
      %p125 = por %p123, %p124
      %p126 = scmp.ne.s32.totalorder %s114, %s115
      %p127 = scmp.eq.s32.totalorder %s21, 1
      %p128 = por %p126, %p127
      %p130 = scmp.ne.s32.totalorder %s115, %s129
      %p131 = scmp.eq.s32.totalorder %s21, 0
      %p132 = por %p130, %p131
      %s134 = sadd.s32 %s133, 1
      %p137 = scmp.eq.s32.totalorder %s15, 1
      %p138 = scmp.ne.s32.totalorder %s133, %s135
      %p139 = scmp.eq.s32.totalorder %s15, 0
      %p140 = por %p138, %p139
      %p141 = scmp.ne.s32.totalorder %s133, %s135
      %p142 = scmp.eq.s32.totalorder %s20, 1
      %p143 = por %p141, %p142
      %p144 = scmp.ne.s32.totalorder %s135, %s136
      %p145 = scmp.eq.s32.totalorder %s20, 0
      %p146 = por %p144, %p145
      %p147 = scmp.ne.s32.totalorder %s135, %s136
      %p148 = scmp.eq.s32.totalorder %s21, 1
      %p149 = por %p147, %p148
      %p151 = scmp.ne.s32.totalorder %s136, %s150
      %p152 = scmp.eq.s32.totalorder %s21, 0
      %p153 = por %p151, %p152
      %s154 = ssub.s32 %s15, %s22
      %p155 = scmp.eq.s32.totalorder %s154, 0
      %s157 = sadd.s32 %s156, 1
      %s158 = scalar_select %p155, %s156, %s157
      %p161 = pneg %p155
      %p162 = scmp.eq.s32.totalorder %s15, 1
      %p163 = por %p161, %p162
      %p164 = scmp.ne.s32.totalorder %s156, %s159
      %p165 = scmp.eq.s32.totalorder %s15, 0
      %p166 = por %p164, %p165
      %p167 = scmp.ne.s32.totalorder %s156, %s159
      %p168 = scmp.eq.s32.totalorder %s20, 1
      %p169 = por %p167, %p168
      %p170 = scmp.ne.s32.totalorder %s159, %s160
      %p171 = scmp.eq.s32.totalorder %s20, 0
      %p172 = por %p170, %p171
      %p173 = scmp.ne.s32.totalorder %s159, %s160
      %p174 = scmp.eq.s32.totalorder %s21, 1
      %p175 = por %p173, %p174
      %p177 = scmp.ne.s32.totalorder %s160, %s176
      %p178 = scmp.eq.s32.totalorder %s21, 0
      %p179 = por %p177, %p178
      %p180 = scmp.le.s32.totalorder 1, %s15
      %p181 = scmp.lt.s32.totalorder %s15, 3
      %p182 = pnand %p180, %p181
      %p183 = pneg %p182
      // Predicated region
      $region9: #{tpu_custom_call.1} parent=5 // pred_check
        _
      $region10: #{tpu_custom_call.1} parent=5 // pred_check_branch
        %185 = sbr.rel (%p182) target = $region12
      $region11: #{tpu_custom_call.1} parent=5 // pred_region
        %s186 = ssub.s32 %s15, 1
        // Predicated region
        $region13: #{tpu_custom_call.1} parent=11 // pred_check
          %p187 = pneg %p62
        $region14: #{tpu_custom_call.1} parent=11 // pred_check_branch
          %189 = sbr.rel (%p187) target = $region16
        $region15: #{tpu_custom_call.1} parent=11 // pred_region
          _
        $region16: #{tpu_custom_call.1} parent=11 // pred_fallthru
          _
        // Predicated region
        $region17: #{tpu_custom_call.1} parent=11 // pred_check
          %p190 = pneg %p83
        $region18: #{tpu_custom_call.1} parent=11 // pred_check_branch
          %192 = sbr.rel (%p190) target = $region20
        $region19: #{tpu_custom_call.1} parent=11 // pred_region
          _
        $region20: #{tpu_custom_call.1} parent=11 // pred_fallthru
          _
        // Predicated region
        $region21: #{tpu_custom_call.1} parent=11 // pred_check
          %p193 = pneg %p104
        $region22: #{tpu_custom_call.1} parent=11 // pred_check_branch
          %195 = sbr.rel (%p193) target = $region24
        $region23: #{tpu_custom_call.1} parent=11 // pred_region
          _
        $region24: #{tpu_custom_call.1} parent=11 // pred_fallthru
          _
        // Predicated region
        $region25: #{tpu_custom_call.1} parent=11 // pred_check
          %p196 = pneg %p125
        $region26: #{tpu_custom_call.1} parent=11 // pred_check_branch
          %198 = sbr.rel (%p196) target = $region28
        $region27: #{tpu_custom_call.1} parent=11 // pred_region
          _
        $region28: #{tpu_custom_call.1} parent=11 // pred_fallthru
          _
        // Predicated region
        $region29: #{tpu_custom_call.1} parent=11 // pred_check
          %p199 = pneg %p146
        $region30: #{tpu_custom_call.1} parent=11 // pred_check_branch
          %201 = sbr.rel (%p199) target = $region32
        $region31: #{tpu_custom_call.1} parent=11 // pred_region
          _
        $region32: #{tpu_custom_call.1} parent=11 // pred_fallthru
          _
      $region12: #{tpu_custom_call.1} parent=5 // pred_fallthru
        _
      %p202 = scmp.lt.s32.totalorder %s15, 2
      // Predicated region
      $region33: #{tpu_custom_call.1} parent=5 // pred_check
        %p203 = pneg %p202
      $region34: #{tpu_custom_call.1} parent=5 // pred_check_branch
        %205 = sbr.rel (%p203) target = $region36
      $region35: #{tpu_custom_call.1} parent=5 // pred_region
        // Predicated region
        $region37: #{tpu_custom_call.1} parent=35 // pred_check
          %p206 = pneg %p35
        $region38: #{tpu_custom_call.1} parent=35 // pred_check_branch
          %208 = sbr.rel (%p206) target = $region40
        $region39: #{tpu_custom_call.1} parent=35 // pred_region
          %p209 = scmp.lt.s32.totalorder %s15, 1
          %s210 = scalar_select %p209, %s15, 1
          %s211 = smul.addr %s210, 32
          %s212 = smul.addr %s211, 4
          %s213 = scalar_lea.vmem %s0, %s212
        $region40: #{tpu_custom_call.1} parent=35 // pred_fallthru
          _
      $region36: #{tpu_custom_call.1} parent=5 // pred_fallthru
        _
      %p214 = scmp.le.s32.totalorder 1, %s15
      %p215 = scmp.lt.s32.totalorder %s15, 3
      %p216 = pnand %p214, %p215
      %p217 = pneg %p216
      // Predicated region
      $region41: #{tpu_custom_call.1} parent=5 // pred_check
        _
      $region42: #{tpu_custom_call.1} parent=5 // pred_check_branch
        %219 = sbr.rel (%p216) target = $region44
      $region43: #{tpu_custom_call.1} parent=5 // pred_region
        %s220 = ssub.s32 %s15, 1
        %p221 = scmp.lt.s32.totalorder %s20, 1
        %s222 = scalar_select %p221, %s20, 1
        %s223 = smul.addr %s222, 32
        %s224 = smul.addr %s223, 4
        %s225 = scalar_lea.vmem %s0, %s224
        %p226 = pneg %p41
        %p227 = pneg %p38
        %p228 = pneg %p62
        %p229 = pneg %p59
        %p230 = pneg %p83
        %p231 = pneg %p80
        %p232 = pneg %p104
        %p233 = pneg %p101
        %p234 = pneg %p125
        %p235 = pneg %p122
        %p236 = pneg %p146
        %p237 = pneg %p143
        %p238 = pneg %p172
        %p239 = pneg %p169
        %s240 = sand.u32 %s159, 1
        %s241 = scalar_lea.sflag [#allocation3], %s240
        %s242 = sand.u32 %s159, 1
        %s243 = scalar_lea.vmem [#allocation2], %s242
        %p244 = scmp.lt.s32.totalorder %s20, 1
        %s245 = scalar_select %p244, %s20, 1
        %s246 = smul.addr %s245, 32
        %s247 = smul.addr %s246, 4
        %s248 = scalar_lea.vmem %s0, %s247
        %v250 = vld [vmem:[%s248] sm:$0xf]
        %v251 = vld [vmem:[%s248 + $0x4] sm:$0xf]
        %v252 = vld [vmem:[%s248 + $0x8] sm:$0xf]
        %v253 = vld [vmem:[%s248 + $0xc] sm:$0xf]
        %v254 = vld [vmem:[%s248 + $0x10] sm:$0xf]
        %v255 = vld [vmem:[%s248 + $0x14] sm:$0xf]
        %v256 = vld [vmem:[%s248 + $0x18] sm:$0xf]
        %v257 = vld [vmem:[%s248 + $0x1c] sm:$0xf]
        %v258 = vld [vmem:[%s248 + $0x20] sm:$0xf]
        %v259 = vld [vmem:[%s248 + $0x24] sm:$0xf]
        %v260 = vld [vmem:[%s248 + $0x28] sm:$0xf]
        %v261 = vld [vmem:[%s248 + $0x2c] sm:$0xf]
        %v262 = vld [vmem:[%s248 + $0x30] sm:$0xf]
        %v263 = vld [vmem:[%s248 + $0x34] sm:$0xf]
        %v264 = vld [vmem:[%s248 + $0x38] sm:$0xf]
        %v265 = vld [vmem:[%s248 + $0x3c] sm:$0xf]
        %v266 = vld [vmem:[%s248 + $0x40] sm:$0xf]
        %v267 = vld [vmem:[%s248 + $0x44] sm:$0xf]
        %v268 = vld [vmem:[%s248 + $0x48] sm:$0xf]
        %v269 = vld [vmem:[%s248 + $0x4c] sm:$0xf]
        %v270 = vld [vmem:[%s248 + $0x50] sm:$0xf]
        %v271 = vld [vmem:[%s248 + $0x54] sm:$0xf]
        %v272 = vld [vmem:[%s248 + $0x58] sm:$0xf]
        %v273 = vld [vmem:[%s248 + $0x5c] sm:$0xf]
        %v274 = vld [vmem:[%s248 + $0x60] sm:$0xf]
        %v275 = vld [vmem:[%s248 + $0x64] sm:$0xf]
        %v276 = vld [vmem:[%s248 + $0x68] sm:$0xf]
        %v277 = vld [vmem:[%s248 + $0x6c] sm:$0xf]
        %v278 = vld [vmem:[%s248 + $0x70] sm:$0xf]
        %v279 = vld [vmem:[%s248 + $0x74] sm:$0xf]
        %v280 = vld [vmem:[%s248 + $0x78] sm:$0xf]
        %v281 = vld [vmem:[%s248 + $0x7c] sm:$0xf]
        %v282 = vld [vmem:[%s1] sm:$0xf]
        %v283 = vld [vmem:[%s1 + $0x4] sm:$0xf]
        %v284 = vld [vmem:[%s1 + $0x8] sm:$0xf]
        %v285 = vld [vmem:[%s1 + $0xc] sm:$0xf]
        %v286 = vld [vmem:[%s1 + $0x10] sm:$0x3]
        %v287 = vld [vmem:[%s2] sm:$0x1]
        %v289 = vperm.slane %v287, 0
        %v323 = vunpack.c.l.b16 %v250
        %v324 = vunpack.c.l.b16 %v251
        %v325 = vunpack.c.l.b16 %v252
        %v326 = vunpack.c.l.b16 %v253
        %v327 = vunpack.c.l.b16 %v254
        %v328 = vunpack.c.l.b16 %v255
        %v329 = vunpack.c.l.b16 %v256
        %v330 = vunpack.c.l.b16 %v257
        %v331 = vunpack.c.l.b16 %v258
        %v332 = vunpack.c.l.b16 %v259
        %v333 = vunpack.c.l.b16 %v260
        %v334 = vunpack.c.l.b16 %v261
        %v335 = vunpack.c.l.b16 %v262
        %v336 = vunpack.c.l.b16 %v263
        %v337 = vunpack.c.l.b16 %v264
        %v338 = vunpack.c.l.b16 %v265
        %v339 = vunpack.c.l.b16 %v266
        %v340 = vunpack.c.l.b16 %v267
        %v341 = vunpack.c.l.b16 %v268
        %v342 = vunpack.c.l.b16 %v269
        %v343 = vunpack.c.l.b16 %v270
        %v344 = vunpack.c.l.b16 %v271
        %v345 = vunpack.c.l.b16 %v272
        %v346 = vunpack.c.l.b16 %v273
        %v347 = vunpack.c.l.b16 %v274
        %v348 = vunpack.c.l.b16 %v275
        %v349 = vunpack.c.l.b16 %v276
        %v350 = vunpack.c.l.b16 %v277
        %v351 = vunpack.c.l.b16 %v278
        %v352 = vunpack.c.l.b16 %v279
        %v353 = vunpack.c.l.b16 %v280
        %v354 = vunpack.c.l.b16 %v281
        %v355 = vpack.c.b16 %v324, %v323
        %v356 = vpack.c.b16 %v326, %v325
        %v357 = vpack.c.b16 %v328, %v327
        %v358 = vpack.c.b16 %v330, %v329
        %v359 = vpack.c.b16 %v332, %v331
        %v360 = vpack.c.b16 %v334, %v333
        %v361 = vpack.c.b16 %v336, %v335
        %v362 = vpack.c.b16 %v338, %v337
        %v363 = vpack.c.b16 %v340, %v339
        %v364 = vpack.c.b16 %v342, %v341
        %v365 = vpack.c.b16 %v344, %v343
        %v366 = vpack.c.b16 %v346, %v345
        %v367 = vpack.c.b16 %v348, %v347
        %v368 = vpack.c.b16 %v350, %v349
        %v369 = vpack.c.b16 %v352, %v351
        %v370 = vpack.c.b16 %v354, %v353
        %v376 = vunpack.c.l.b16 %v282
        %v377 = vunpack.c.l.b16 %v283
        %v378 = vunpack.c.l.b16 %v284
        %v379 = vunpack.c.l.b16 %v285
        %v380 = vunpack.c.l.b16 %v286
        %v381 = vpack.c.b16 %v377, %v376
        %v382 = vpack.c.b16 %v379, %v378
        %v383 = vpack.c.b16 %v380, %v380
        %vm386 = vcmask 293888
        %v388 = vsel %vm386, %v355, 0
        %v391 = vsel %vm386, %v356, 0
        %v394 = vsel %vm386, %v357, 0
        %v397 = vsel %vm386, %v358, 0
        %v400 = vsel %vm386, %v359, 0
        %v403 = vsel %vm386, %v360, 0
        %v406 = vsel %vm386, %v361, 0
        %v409 = vsel %vm386, %v362, 0
        %v412 = vsel %vm386, %v363, 0
        %v415 = vsel %vm386, %v364, 0
        %v418 = vsel %vm386, %v365, 0
        %v421 = vsel %vm386, %v366, 0
        %v424 = vsel %vm386, %v367, 0
        %v427 = vsel %vm386, %v368, 0
        %v430 = vsel %vm386, %v369, 0
        %v433 = vsel %vm386, %v370, 0
        %vm435 = vcmask 1041408
        %v437 = vsel %vm435, %v383, 0
        %439 = vmatpush.bf16.msra.mxu0 0
        %440 = vmatpush.bf16.msra.mxu0 0
        %441 = vmatpush.bf16.msra.mxu0 0
        %442 = vmatpush.bf16.msra.mxu0 0
        %443 = vmatpush.bf16.msra.mxu0 0
        %444 = vmatpush.bf16.msra.mxu0 %v437
        %445 = vmatpush.bf16.msra.mxu0 %v382
        %446 = vmatpush.bf16.msra.mxu0 %v381
        %447 = vmatmul.bf16.gmra.mxu0 %v388
        %v448 = vpop.f32.mrf.mxu0
        %v449 = vadd.f32 %v289, %v448
        %v450 = vpop.f32.mrf.mxu0
        %v451 = vadd.f32 %v289, %v450
        %452 = vmatmul.bf16.gmra.mxu0 %v391
        %v453 = vpop.f32.mrf.mxu0
        %v454 = vadd.f32 %v289, %v453
        %v455 = vpop.f32.mrf.mxu0
        %v456 = vadd.f32 %v289, %v455
        %457 = vmatmul.bf16.gmra.mxu0 %v394
        %v458 = vpop.f32.mrf.mxu0
        %v459 = vadd.f32 %v289, %v458
        %v460 = vpop.f32.mrf.mxu0
        %v461 = vadd.f32 %v289, %v460
        %462 = vmatmul.bf16.gmra.mxu0 %v397
        %v463 = vpop.f32.mrf.mxu0
        %v464 = vadd.f32 %v289, %v463
        %v465 = vpop.f32.mrf.mxu0
        %v466 = vadd.f32 %v289, %v465
        %467 = vmatmul.bf16.gmra.mxu0 %v400
        %v468 = vpop.f32.mrf.mxu0
        %v469 = vadd.f32 %v289, %v468
        %v470 = vpop.f32.mrf.mxu0
        %v471 = vadd.f32 %v289, %v470
        %472 = vmatmul.bf16.gmra.mxu0 %v403
        %v473 = vpop.f32.mrf.mxu0
        %v474 = vadd.f32 %v289, %v473
        %v475 = vpop.f32.mrf.mxu0
        %v476 = vadd.f32 %v289, %v475
        %477 = vmatmul.bf16.gmra.mxu0 %v406
        %v478 = vpop.f32.mrf.mxu0
        %v479 = vadd.f32 %v289, %v478
        %v480 = vpop.f32.mrf.mxu0
        %v481 = vadd.f32 %v289, %v480
        %482 = vmatmul.bf16.gmra.mxu0 %v409
        %v483 = vpop.f32.mrf.mxu0
        %v484 = vadd.f32 %v289, %v483
        %v485 = vpop.f32.mrf.mxu0
        %v486 = vadd.f32 %v289, %v485
        %487 = vmatmul.bf16.gmra.mxu0 %v412
        %v488 = vpop.f32.mrf.mxu0
        %v489 = vadd.f32 %v289, %v488
        %v490 = vpop.f32.mrf.mxu0
        %v491 = vadd.f32 %v289, %v490
        %492 = vmatmul.bf16.gmra.mxu0 %v415
        %v493 = vpop.f32.mrf.mxu0
        %v494 = vadd.f32 %v289, %v493
        %v495 = vpop.f32.mrf.mxu0
        %v496 = vadd.f32 %v289, %v495
        %497 = vmatmul.bf16.gmra.mxu0 %v418
        %v498 = vpop.f32.mrf.mxu0
        %v499 = vadd.f32 %v289, %v498
        %v500 = vpop.f32.mrf.mxu0
        %v501 = vadd.f32 %v289, %v500
        %502 = vmatmul.bf16.gmra.mxu0 %v421
        %v503 = vpop.f32.mrf.mxu0
        %v504 = vadd.f32 %v289, %v503
        %v505 = vpop.f32.mrf.mxu0
        %v506 = vadd.f32 %v289, %v505
        %507 = vmatmul.bf16.gmra.mxu0 %v424
        %v508 = vpop.f32.mrf.mxu0
        %v509 = vadd.f32 %v289, %v508
        %v510 = vpop.f32.mrf.mxu0
        %v511 = vadd.f32 %v289, %v510
        %512 = vmatmul.bf16.gmra.mxu0 %v427
        %v513 = vpop.f32.mrf.mxu0
        %v514 = vadd.f32 %v289, %v513
        %v515 = vpop.f32.mrf.mxu0
        %v516 = vadd.f32 %v289, %v515
        %517 = vmatmul.bf16.gmra.mxu0 %v430
        %v518 = vpop.f32.mrf.mxu0
        %v519 = vadd.f32 %v289, %v518
        %v520 = vpop.f32.mrf.mxu0
        %v521 = vadd.f32 %v289, %v520
        %522 = vmatmul.bf16.gmra.mxu0 %v433
        %v523 = vpop.f32.mrf.mxu0
        %v524 = vadd.f32 %v289, %v523
        %v525 = vpop.f32.mrf.mxu0
        %v526 = vadd.f32 %v289, %v525
        %527 = vdwg.mxu0
        %v528 = vmax.f32 %v449, 0.0
        %v529 = vmax.f32 %v451, 0.0
        %v530 = vmax.f32 %v454, 0.0
        %v531 = vmax.f32 %v456, 0.0
        %v532 = vmax.f32 %v459, 0.0
        %v533 = vmax.f32 %v461, 0.0
        %v534 = vmax.f32 %v464, 0.0
        %v535 = vmax.f32 %v466, 0.0
        %v536 = vmax.f32 %v469, 0.0
        %v537 = vmax.f32 %v471, 0.0
        %v538 = vmax.f32 %v474, 0.0
        %v539 = vmax.f32 %v476, 0.0
        %v540 = vmax.f32 %v479, 0.0
        %v541 = vmax.f32 %v481, 0.0
        %v542 = vmax.f32 %v484, 0.0
        %v543 = vmax.f32 %v486, 0.0
        %v544 = vmax.f32 %v489, 0.0
        %v545 = vmax.f32 %v491, 0.0
        %v546 = vmax.f32 %v494, 0.0
        %v547 = vmax.f32 %v496, 0.0
        %v548 = vmax.f32 %v499, 0.0
        %v549 = vmax.f32 %v501, 0.0
        %v550 = vmax.f32 %v504, 0.0
        %v551 = vmax.f32 %v506, 0.0
        %v552 = vmax.f32 %v509, 0.0
        %v553 = vmax.f32 %v511, 0.0
        %v554 = vmax.f32 %v514, 0.0
        %v555 = vmax.f32 %v516, 0.0
        %v556 = vmax.f32 %v519, 0.0
        %v557 = vmax.f32 %v521, 0.0
        %v558 = vmax.f32 %v524, 0.0
        %v559 = vmax.f32 %v526, 0.0
        %v560 = vld [vmem:[%s3] sm:$0x3]
        %v561 = vpack.c.bf16 %v529, %v528
        %v562 = vpack.c.bf16 %v531, %v530
        %v563 = vpack.c.bf16 %v533, %v532
        %v564 = vpack.c.bf16 %v535, %v534
        %v565 = vpack.c.bf16 %v537, %v536
        %v566 = vpack.c.bf16 %v539, %v538
        %v567 = vpack.c.bf16 %v541, %v540
        %v568 = vpack.c.bf16 %v543, %v542
        %v569 = vpack.c.bf16 %v545, %v544
        %v570 = vpack.c.bf16 %v547, %v546
        %v571 = vpack.c.bf16 %v549, %v548
        %v572 = vpack.c.bf16 %v551, %v550
        %v573 = vpack.c.bf16 %v553, %v552
        %v574 = vpack.c.bf16 %v555, %v554
        %v575 = vpack.c.bf16 %v557, %v556
        %v576 = vpack.c.bf16 %v559, %v558
        %578 = vst [vmem:[#allocation1] ss:$9 sm:$0xff] %v560
        %v579 = vld [vmem:[#allocation1] sm:$0xff]
        %v580 = vld [vmem:[#allocation1 + $0x9] sm:$0xff]
        %583 = vmatpush.bf16.msra.mxu0 %v568
        %584 = vmatpush.bf16.msra.mxu0 %v567
        %585 = vmatpush.bf16.msra.mxu0 %v566
        %586 = vmatpush.bf16.msra.mxu0 %v565
        %587 = vmatpush.bf16.msra.mxu0 %v564
        %588 = vmatpush.bf16.msra.mxu0 %v563
        %589 = vmatpush.bf16.msra.mxu0 %v562
        %590 = vmatpush.bf16.msra.mxu0 %v561
        %591 = vmatmul.bf16.gmra.mxu0 %v579
        %v592 = vpop.f32.mrf.mxu0
        %v593 = vadd.f32 0.0, %v592
        %v594 = vpop.f32.mrf.mxu0
        %595 = vdwg.mxu0
        %596 = vmatpush.bf16.msra.mxu0 %v576
        %597 = vmatpush.bf16.msra.mxu0 %v575
        %598 = vmatpush.bf16.msra.mxu0 %v574
        %599 = vmatpush.bf16.msra.mxu0 %v573
        %600 = vmatpush.bf16.msra.mxu0 %v572
        %601 = vmatpush.bf16.msra.mxu0 %v571
        %602 = vmatpush.bf16.msra.mxu0 %v570
        %603 = vmatpush.bf16.msra.mxu0 %v569
        %604 = vmatmul.bf16.gmra.mxu0 %v580
        %v605 = vpop.f32.mrf.mxu0
        %v606 = vadd.f32 %v593, %v605
        %v607 = vpop.f32.mrf.mxu0
        %608 = vdwg.mxu0
        %v609 = vmul.f32 %v606, 0.00390625
        %v610 = vpack.c.bf16 %v609, %v609
        %v611 = vld [vmem:[%s4] sm:$0xf]
        %v612 = vld [vmem:[%s4 + $0x4] sm:$0xf]
        %v613 = vld [vmem:[%s4 + $0x8] sm:$0xf]
        %v614 = vld [vmem:[%s4 + $0xc] sm:$0xf]
        %v615 = vld [vmem:[%s4 + $0x10] sm:$0xf]
        %v616 = vld [vmem:[%s4 + $0x14] sm:$0xf]
        %v617 = vld [vmem:[%s4 + $0x18] sm:$0xf]
        %v618 = vld [vmem:[%s4 + $0x1c] sm:$0xf]
        %v619 = vld [vmem:[%s4 + $0x20] sm:$0xf]
        %v620 = vld [vmem:[%s4 + $0x24] sm:$0xf]
        %v621 = vld [vmem:[%s4 + $0x28] sm:$0xf]
        %v622 = vld [vmem:[%s4 + $0x2c] sm:$0xf]
        %v623 = vld [vmem:[%s4 + $0x30] sm:$0xf]
        %v624 = vld [vmem:[%s4 + $0x34] sm:$0xf]
        %v625 = vld [vmem:[%s4 + $0x38] sm:$0xf]
        %v626 = vld [vmem:[%s4 + $0x3c] sm:$0xf]
        %v627 = vld [vmem:[%s5] sm:$0x1]
        %v644 = vunpack.c.l.b16 %v611
        %v645 = vunpack.c.l.b16 %v612
        %v646 = vunpack.c.l.b16 %v613
        %v647 = vunpack.c.l.b16 %v614
        %v648 = vunpack.c.l.b16 %v615
        %v649 = vunpack.c.l.b16 %v616
        %v650 = vunpack.c.l.b16 %v617
        %v651 = vunpack.c.l.b16 %v618
        %v652 = vunpack.c.l.b16 %v619
        %v653 = vunpack.c.l.b16 %v620
        %v654 = vunpack.c.l.b16 %v621
        %v655 = vunpack.c.l.b16 %v622
        %v656 = vunpack.c.l.b16 %v623
        %v657 = vunpack.c.l.b16 %v624
        %v658 = vunpack.c.l.b16 %v625
        %v659 = vunpack.c.l.b16 %v626
        %v660 = vpack.c.b16 %v645, %v644
        %v661 = vpack.c.b16 %v647, %v646
        %v662 = vpack.c.b16 %v649, %v648
        %v663 = vpack.c.b16 %v651, %v650
        %v664 = vpack.c.b16 %v653, %v652
        %v665 = vpack.c.b16 %v655, %v654
        %v666 = vpack.c.b16 %v657, %v656
        %v667 = vpack.c.b16 %v659, %v658
        %676 = vmatpush.bf16.msra.mxu0 %v667
        %677 = vmatpush.bf16.msra.mxu0 %v666
        %678 = vmatpush.bf16.msra.mxu0 %v665
        %679 = vmatpush.bf16.msra.mxu0 %v664
        %680 = vmatpush.bf16.msra.mxu0 %v663
        %681 = vmatpush.bf16.msra.mxu0 %v662
        %682 = vmatpush.bf16.msra.mxu0 %v661
        %683 = vmatpush.bf16.msra.mxu0 %v660
        %684 = vmatmul.bf16.gmra.mxu0 %v610
        %v685 = vpop.f32.mrf.mxu0
        %v686 = vadd.f32 %v627, %v685
        %v687 = vpop.f32.mrf.mxu0
        %688 = vdwg.mxu0
        %689 = vst [vmem:[%s243] sm:$0x1] %v686
        %s690 = sand.u32 %s159, 1
        %s691 = scalar_lea.sflag [#allocation3], %s690
        %s692 = sand.u32 %s159, 1
        %s693 = scalar_lea.vmem [#allocation2], %s692
        // Predicated region
        $region45: #{tpu_custom_call.1} parent=43 // pred_check
          %p694 = pneg %p169
        $region46: #{tpu_custom_call.1} parent=43 // pred_check_branch
          %696 = sbr.rel (%p694) target = $region48
        $region47: #{tpu_custom_call.1} parent=43 // pred_region
          %698 = vsyncadd %s691, 0
          %s699 = scalar_lea.hbm %s6, %s20
          %s701 = sshll.u32 %s693, 4
          %s702 = int_to_ptr.vmem [resolvable:$true] %s701
          %s703 = sshll.u32 %s699, 4
          %s704 = int_to_ptr.hbm [resolvable:$true] %s703
          %706 = dma.vmem_to_hbm [thread:$0]  %s702, 16, %s704, %s691
        $region48: #{tpu_custom_call.1} parent=43 // pred_fallthru
          _
      $region44: #{tpu_custom_call.1} parent=5 // pred_fallthru
        _
      %p707 = scmp.le.s32.totalorder 2, %s15
      // Predicated region
      $region49: #{tpu_custom_call.1} parent=5 // pred_check
        %p708 = pneg %p707
      $region50: #{tpu_custom_call.1} parent=5 // pred_check_branch
        %710 = sbr.rel (%p708) target = $region52
      $region51: #{tpu_custom_call.1} parent=5 // pred_region
        %s711 = ssub.s32 %s15, 2
        // Predicated region
        $region53: #{tpu_custom_call.1} parent=51 // pred_check
          %p712 = pneg %p175
        $region54: #{tpu_custom_call.1} parent=51 // pred_check_branch
          %714 = sbr.rel (%p712) target = $region56
        $region55: #{tpu_custom_call.1} parent=51 // pred_region
          %s715 = sand.u32 %s160, 1
          %s716 = scalar_lea.sflag [#allocation3], %s715
          %s717 = sand.u32 %s160, 1
          %s718 = scalar_lea.vmem [#allocation2], %s717
          %720 = dma.done %s716, 16
        $region56: #{tpu_custom_call.1} parent=51 // pred_fallthru
          _
      $region52: #{tpu_custom_call.1} parent=5 // pred_fallthru
        _
    $region6: #{tpu_custom_call.1} parent=1 // loop_footer
      %s19 = sadd.s32 1, %s15
    $region7: #{tpu_custom_call.1} parent=1 // loop_footer_branch
      %14 = sbr.rel target = $region3
    $region8: #{tpu_custom_call.1} parent=1 // loop_exit
      _
    %721 = vsyncpa [#allocation3], 1
    %s722 = scalar_lea.sflag [#allocation3], 1
    %723 = vsyncpa %s722, 1

</llo_original>
